<compile_context>
chip_gen: v6e
topology: v6e:2x2x1
jax: 0.10.0
libtpu: 0.0.40
codegen_flags: <defaults>
</compile_context>

<pallas_src>
import math

import jax
import jax.numpy as jnp
from jax.experimental import pallas as pl
from jax.experimental.pallas import tpu as pltpu

LAYER_SIZES = [32, 64, 128, 256]
N_IN = 11
N_OUT = 3
OUT_PAD = 8            # padded classifier width (== full out-array last dim; real cols 0..2)
LN_EPS = 1e-5          # PyTorch nn.LayerNorm default

# Row layout of the packed f32 "side" operand (one operand instead of four).
ROW_B1, ROW_G1, ROW_BE1 = 0, 1, 2            # fused first-block bias / LN gamma / LN beta (64 cols)
ROW_B2, ROW_G2, ROW_BE2 = 3, 4, 5            # block 2 (128 cols)
ROW_B3, ROW_G3, ROW_BE3 = 6, 7, 8            # block 3 (256 cols)
ROW_BC, ROW_PRE, ROW_POST, ROW_OFF = 9, 10, 11, 12   # classifier bias / activation consts (OUT_PAD cols)
SIDE_ROWS, SIDE_COLS = 16, 256               # sublane/lane aligned


def _round_up(n, m):
    return ((n + m - 1) // m) * m


def _ln_relu_bf16(h, gamma, beta):
    """LayerNorm (f32) + ReLU, returning bf16 ready for the next MXU matmul."""
    mu = jnp.mean(h, axis=-1, keepdims=True)
    var = jnp.mean(h * h, axis=-1, keepdims=True) - mu * mu
    var = jnp.maximum(var, 0.0)                       # guard f32 cancellation -> NaN in rsqrt
    y = (h - mu) * jax.lax.rsqrt(var + LN_EPS) * gamma + beta
    return jnp.maximum(y, 0.0).astype(jnp.bfloat16)


def state_agent_kernel(
    x_ref,       # (TB, N_IN)        f32
    w01_ref,     # (N_IN, 64)        bf16   (fused Linear0 @ Linear1)
    w2_ref,      # (64, 128)         bf16
    w3_ref,      # (128, 256)        bf16
    wc_ref,      # (256, OUT_PAD)    bf16
    side_ref,    # (SIDE_ROWS, SIDE_COLS) f32  packed biases / LN params / activation consts
    out_ref,     # (TB, OUT_PAD)     f32
):
    side = side_ref[...]
    x = x_ref[...].astype(jnp.bfloat16)

    # Fused Linear(11->32)@Linear(32->64) (no nonlinearity between them), then LN + ReLU.
    h = jnp.dot(x, w01_ref[...], preferred_element_type=jnp.float32) + side[ROW_B1:ROW_B1 + 1, :64]
    h = _ln_relu_bf16(h, side[ROW_G1:ROW_G1 + 1, :64], side[ROW_BE1:ROW_BE1 + 1, :64])

    # Block 2: Linear(64 -> 128) + LayerNorm + ReLU
    h = jnp.dot(h, w2_ref[...], preferred_element_type=jnp.float32) + side[ROW_B2:ROW_B2 + 1, :128]
    h = _ln_relu_bf16(h, side[ROW_G2:ROW_G2 + 1, :128], side[ROW_BE2:ROW_BE2 + 1, :128])

    # Block 3: Linear(128 -> 256) + LayerNorm + ReLU
    h = jnp.dot(h, w3_ref[...], preferred_element_type=jnp.float32) + side[ROW_B3:ROW_B3 + 1, :]
    h = _ln_relu_bf16(h, side[ROW_G3:ROW_G3 + 1, :], side[ROW_BE3:ROW_BE3 + 1, :])

    # Classifier: Linear(256 -> 3), padded to OUT_PAD lanes (== full output width).
    z = jnp.dot(h, wc_ref[...], preferred_element_type=jnp.float32) + side[ROW_BC:ROW_BC + 1, :OUT_PAD]

    # col 0 -> sigmoid (acceleration), col 1 -> tanh (steer), col 2 -> sigmoid (brake).
    # One transcendental per element: out = tanh(z*pre)*post + off,
    # with sigmoid cols (pre, post, off) = (0.5, 0.5, 0.5), tanh col = (1, 1, 0), pad cols = 0.
    pre = side[ROW_PRE:ROW_PRE + 1, :OUT_PAD]
    post = side[ROW_POST:ROW_POST + 1, :OUT_PAD]
    off = side[ROW_OFF:ROW_OFF + 1, :OUT_PAD]
    out_ref[...] = jnp.tanh(z * pre) * post + off


def init_params(key):
    """Raw (unfused) params mirroring torch defaults: Linear U(-1/sqrt(fan_in), 1/sqrt(fan_in));
    LayerNorm weight=1, bias=0.  Weights stored as (in, out)."""
    dims = [N_IN] + LAYER_SIZES  # [11, 32, 64, 128, 256]
    params = []
    keys = jax.random.split(key, 16)
    ki = 0

    def linear(fan_in, fan_out):
        nonlocal ki
        bound = 1.0 / math.sqrt(fan_in)
        w = jax.random.uniform(keys[ki], (fan_in, fan_out), jnp.float32, -bound, bound)
        b = jax.random.uniform(keys[ki + 1], (1, fan_out), jnp.float32, -bound, bound)
        ki += 2
        return w, b

    w0, b0 = linear(dims[0], dims[1])
    params += [w0, b0]
    for i in range(1, len(dims) - 1):
        w, b = linear(dims[i], dims[i + 1])
        g = jnp.ones((1, dims[i + 1]), jnp.float32)
        be = jnp.zeros((1, dims[i + 1]), jnp.float32)
        params += [w, b, g, be]
    wc, bc = linear(dims[-1], N_OUT)
    params += [wc, bc]
    return params


def pack_params(params):
    """Fuse the first two Linears offline, pack every small f32 operand into one (16,256)
    block, zero-pad the classifier to OUT_PAD lanes, cast matmul weights to bf16."""
    (w0, b0,
     w1, b1, g1, be1,
     w2, b2, g2, be2,
     w3, b3, g3, be3,
     wc, bc) = params

    w01 = w0 @ w1                    # (N_IN, 64)
    b01 = b0 @ w1 + b1               # (1, 64)

    side = jnp.zeros((SIDE_ROWS, SIDE_COLS), jnp.float32)
    side = side.at[ROW_B1, :64].set(b01[0])
    side = side.at[ROW_G1, :64].set(g1[0])
    side = side.at[ROW_BE1, :64].set(be1[0])
    side = side.at[ROW_B2, :128].set(b2[0])
    side = side.at[ROW_G2, :128].set(g2[0])
    side = side.at[ROW_BE2, :128].set(be2[0])
    side = side.at[ROW_B3, :256].set(b3[0])
    side = side.at[ROW_G3, :256].set(g3[0])
    side = side.at[ROW_BE3, :256].set(be3[0])
    side = side.at[ROW_BC, :N_OUT].set(bc[0])
    # activation constants: sigmoid -> (0.5, 0.5, 0.5); tanh -> (1, 1, 0); padding -> 0
    pre = jnp.array([0.5, 1.0, 0.5] + [0.0] * (OUT_PAD - 3), jnp.float32)
    post = jnp.array([0.5, 1.0, 0.5] + [0.0] * (OUT_PAD - 3), jnp.float32)
    off = jnp.array([0.5, 0.0, 0.5] + [0.0] * (OUT_PAD - 3), jnp.float32)
    side = side.at[ROW_PRE, :OUT_PAD].set(pre)
    side = side.at[ROW_POST, :OUT_PAD].set(post)
    side = side.at[ROW_OFF, :OUT_PAD].set(off)

    wc_pad = jnp.zeros((LAYER_SIZES[-1], OUT_PAD), jnp.float32).at[:, :N_OUT].set(wc)

    return (w01.astype(jnp.bfloat16),
            w2.astype(jnp.bfloat16),
            w3.astype(jnp.bfloat16),
            wc_pad.astype(jnp.bfloat16),
            side)


def _choose_tiling(B, block_b):
    """Batch tile TB and padded batch. Small batches: one sublane-aligned tile.
    Large batches: tiles are multiples of 512, capped so the grid has >= 2 steps
    (keeps both v7x TensorCores busy)."""
    B8 = _round_up(max(B, 1), 8)
    if B8 <= 1024:
        TB = B8
    else:
        TB = min(block_b, _round_up(pl.cdiv(B8, 2), 512))
    B_pad = _round_up(B8, TB)
    return TB, B_pad


def state_agent_forward(x, kernel_params, *, block_b=2048):
    """x: (B, N_IN) f32.  Returns (acceleration, steer, brake), each (B, 1)."""
    B = x.shape[0]
    TB, B_pad = _choose_tiling(B, block_b)
    if B_pad != B:
        x = jnp.pad(x, ((0, B_pad - B), (0, 0)))

    (w01, w2, w3, wc, side) = kernel_params

    def const(shape):
        # Weights / packed side data stay VMEM-resident across batch tiles.
        return pl.BlockSpec(shape, lambda i: (0, 0))

    in_specs = [
        pl.BlockSpec((TB, N_IN), lambda i: (i, 0)),
        const(w01.shape), const(w2.shape), const(w3.shape), const(wc.shape), const(side.shape),
    ]
    out_specs = pl.BlockSpec((TB, OUT_PAD), lambda i: (i, 0))

    param_bytes = sum(int(p.size) * p.dtype.itemsize for p in kernel_params)
    cost = pl.CostEstimate(
        flops=2 * B_pad * (N_IN * 64 + 64 * 128 + 128 * 256 + 256 * OUT_PAD),
        transcendentals=B_pad * OUT_PAD,
        bytes_accessed=B_pad * N_IN * 4 + B_pad * OUT_PAD * 4 + param_bytes,
    )

    z_act = pl.pallas_call(
        state_agent_kernel,
        out_shape=jax.ShapeDtypeStruct((B_pad, OUT_PAD), jnp.float32),
        grid=(B_pad // TB,),
        in_specs=in_specs,
        out_specs=out_specs,
        compiler_params=pltpu.CompilerParams(
            dimension_semantics=("parallel",),        # shard batch tiles across TCs on v7x
            vmem_limit_bytes=48 * 1024 * 1024,        # headroom for TB up to 4096, < v7x 64 MiB/TC
        ),
        cost_estimate=cost,
    )(x, *kernel_params)

    z_act = z_act[:B]
    return z_act[:, 0:1], z_act[:, 1:2], z_act[:, 2:3]


# ------------------------------ references (for self-test) ------------------------------

def _ln_ref(h, g, b):
    mu = jnp.mean(h, axis=-1, keepdims=True)
    var = jnp.mean((h - mu) ** 2, axis=-1, keepdims=True)
    return (h - mu) / jnp.sqrt(var + LN_EPS) * g + b


def reference_forward_f32(x, params):
    """Pure-f32 JAX reference with the original (unfused) parameterization."""
    (w0, b0,
     w1, b1, g1, be1,
     w2, b2, g2, be2,
     w3, b3, g3, be3,
     wc, bc) = params
    h = x @ w0 + b0
    h = jnp.maximum(_ln_ref(h @ w1 + b1, g1, be1), 0.0)
    h = jnp.maximum(_ln_ref(h @ w2 + b2, g2, be2), 0.0)
    h = jnp.maximum(_ln_ref(h @ w3 + b3, g3, be3), 0.0)
    z = h @ wc + bc
    return (jax.nn.sigmoid(z[:, 0:1]), jnp.tanh(z[:, 1:2]), jax.nn.sigmoid(z[:, 2:3]))


def reference_forward_bf16(x, kernel_params):
    """JAX emulation of the kernel's bf16-matmul / f32-accumulate numerics."""
    (w01, w2, w3, wc, side) = kernel_params

    def dot(a, w):
        return jnp.dot(a.astype(jnp.bfloat16), w, preferred_element_type=jnp.float32)

    h = dot(x, w01) + side[ROW_B1:ROW_B1 + 1, :64]
    h = jnp.maximum(_ln_ref(h, side[ROW_G1:ROW_G1 + 1, :64], side[ROW_BE1:ROW_BE1 + 1, :64]), 0.0)
    h = dot(h, w2) + side[ROW_B2:ROW_B2 + 1, :128]
    h = jnp.maximum(_ln_ref(h, side[ROW_G2:ROW_G2 + 1, :128], side[ROW_BE2:ROW_BE2 + 1, :128]), 0.0)
    h = dot(h, w3) + side[ROW_B3:ROW_B3 + 1, :256]
    h = jnp.maximum(_ln_ref(h, side[ROW_G3:ROW_G3 + 1, :256], side[ROW_BE3:ROW_BE3 + 1, :256]), 0.0)
    z = dot(h, wc) + side[ROW_BC:ROW_BC + 1, :OUT_PAD]
    return (jax.nn.sigmoid(z[:, 0:1]), jnp.tanh(z[:, 1:2]), jax.nn.sigmoid(z[:, 2:3]))


if __name__ == "__main__":
    key = jax.random.PRNGKey(0)
    kx, kp = jax.random.split(key)

    B = 8
    x = jax.random.normal(kx, (B, N_IN), jnp.float32)
    raw_params = init_params(kp)
    kernel_params = pack_params(raw_params)

    acc, steer, brake = state_agent_forward(x, kernel_params)
    jax.block_until_ready((acc, steer, brake))

    # shape / range checks mirroring the torch asserts
    assert acc.shape == (B, 1) and steer.shape == (B, 1) and brake.shape == (B, 1)
    assert bool(jnp.all((acc >= 0) & (acc <= 1)))
    assert bool(jnp.all((steer >= -1) & (steer <= 1)))
    assert bool(jnp.all((brake >= 0) & (brake <= 1)))

    # exact-numerics check against a JAX emulation of the kernel's bf16/f32 math
    e_acc, e_steer, e_brake = reference_forward_bf16(x, kernel_params)
    assert jnp.allclose(acc, e_acc, atol=5e-3)
    assert jnp.allclose(steer, e_steer, atol=5e-3)
    assert jnp.allclose(brake, e_brake, atol=5e-3)

    # end-to-end semantic check against the original f32 module math
    # (bf16 matmuls + fused first layer => loosened tolerance vs. a 1e-5 f32-only check)
    r_acc, r_steer, r_brake = reference_forward_f32(x, raw_params)
    assert jnp.allclose(acc, r_acc, atol=5e-2)
    assert jnp.allclose(steer, r_steer, atol=5e-2)
    assert jnp.allclose(brake, r_brake, atol=5e-2)

    # multi-tile path (grid >= 2, batch padding) correctness check
    B2 = 1500
    x2 = jax.random.normal(jax.random.PRNGKey(1), (B2, N_IN), jnp.float32)
    a2, s2, b2 = state_agent_forward(x2, kernel_params, block_b=1024)
    jax.block_until_ready((a2, s2, b2))
    ea2, es2, eb2 = reference_forward_bf16(x2, kernel_params)
    assert a2.shape == (B2, 1) and s2.shape == (B2, 1) and b2.shape == (B2, 1)
    assert jnp.allclose(a2, ea2, atol=5e-3)
    assert jnp.allclose(s2, es2, atol=5e-3)
    assert jnp.allclose(b2, eb2, atol=5e-3)

    print("KERNEL_OK")
</pallas_src>

<mosaic_0001>
module attributes {stable_mosaic.version = 11 : i64} {
  func.func @state_agent_kernel(%arg0: i32, %arg1: memref<8x11xf32, #tpu.memory_space<vmem>>, %arg2: memref<11x64xbf16, #tpu.memory_space<vmem>>, %arg3: memref<64x128xbf16, #tpu.memory_space<vmem>>, %arg4: memref<128x256xbf16, #tpu.memory_space<vmem>>, %arg5: memref<256x8xbf16, #tpu.memory_space<vmem>>, %arg6: memref<16x256xf32, #tpu.memory_space<vmem>>, %arg7: memref<8x8xf32, #tpu.memory_space<vmem>>) attributes {dimension_semantics = [#tpu.dimension_semantics<parallel>], iteration_bounds = array<i64: 1>, scalar_prefetch = 0 : i64, scratch_operands = 0 : i64, tpu.core_type = #tpu.core_type<tc>, window_params = [{transform_indices = @transform_0, window_bounds = array<i64: 8, 11>}, {pipeline_mode = #tpu.pipeline_mode<synchronous>, transform_indices = @transform_1, window_bounds = array<i64: 11, 64>}, {pipeline_mode = #tpu.pipeline_mode<synchronous>, transform_indices = @transform_2, window_bounds = array<i64: 64, 128>}, {pipeline_mode = #tpu.pipeline_mode<synchronous>, transform_indices = @transform_3, window_bounds = array<i64: 128, 256>}, {pipeline_mode = #tpu.pipeline_mode<synchronous>, transform_indices = @transform_4, window_bounds = array<i64: 256, 8>}, {pipeline_mode = #tpu.pipeline_mode<synchronous>, transform_indices = @transform_5, window_bounds = array<i64: 16, 256>}, {transform_indices = @transform_6, window_bounds = array<i64: 8, 8>}]} {
    %c0 = arith.constant 0 : index
    %c0_0 = arith.constant 0 : index
    %0 = vector.load %arg6[%c0, %c0_0] : memref<16x256xf32, #tpu.memory_space<vmem>>, vector<16x256xf32>
    %c0_1 = arith.constant 0 : index
    %c0_2 = arith.constant 0 : index
    %1 = vector.load %arg1[%c0_1, %c0_2] : memref<8x11xf32, #tpu.memory_space<vmem>>, vector<8x11xf32>
    %2 = arith.truncf %1 : vector<8x11xf32> to vector<8x11xbf16>
    %c0_3 = arith.constant 0 : index
    %c0_4 = arith.constant 0 : index
    %3 = vector.load %arg2[%c0_3, %c0_4] : memref<11x64xbf16, #tpu.memory_space<vmem>>, vector<11x64xbf16>
    %cst = arith.constant dense<0.000000e+00> : vector<8x64xf32>
    %4 = tpu.matmul %2, %3, %cst {dimension_numbers = #tpu.dot_dimension_numbers<[1], [0], [0], [1], [0, 0, 1, 1], [], []>} : vector<8x11xbf16>, vector<11x64xbf16>, vector<8x64xf32> -> vector<8x64xf32>
    %5 = vector.extract_strided_slice %0 {offsets = [0, 0], sizes = [1, 64], strides = [1, 1]} : vector<16x256xf32> to vector<1x64xf32>
    %6 = vector.broadcast %5 : vector<1x64xf32> to vector<8x64xf32>
    %7 = arith.addf %4, %6 : vector<8x64xf32>
    %8 = vector.extract_strided_slice %0 {offsets = [1, 0], sizes = [1, 64], strides = [1, 1]} : vector<16x256xf32> to vector<1x64xf32>
    %9 = vector.extract_strided_slice %0 {offsets = [2, 0], sizes = [1, 64], strides = [1, 1]} : vector<16x256xf32> to vector<1x64xf32>
    %cst_5 = arith.constant dense<0.000000e+00> : vector<8xf32>
    %10 = vector.multi_reduction <add>, %7, %cst_5 [1] : vector<8x64xf32> to vector<8xf32>
    %11 = vector.shape_cast %10 : vector<8xf32> to vector<8x1xf32>
    %cst_6 = arith.constant 6.400000e+01 : f32
    %12 = vector.broadcast %cst_6 : f32 to vector<8x1xf32>
    %13 = arith.divf %11, %12 : vector<8x1xf32>
    %14 = arith.mulf %7, %7 : vector<8x64xf32>
    %cst_7 = arith.constant dense<0.000000e+00> : vector<8xf32>
    %15 = vector.multi_reduction <add>, %14, %cst_7 [1] : vector<8x64xf32> to vector<8xf32>
    %16 = vector.shape_cast %15 : vector<8xf32> to vector<8x1xf32>
    %cst_8 = arith.constant 6.400000e+01 : f32
    %17 = vector.broadcast %cst_8 : f32 to vector<8x1xf32>
    %18 = arith.divf %16, %17 : vector<8x1xf32>
    %19 = arith.mulf %13, %13 : vector<8x1xf32>
    %20 = arith.subf %18, %19 : vector<8x1xf32>
    %cst_9 = arith.constant 0.000000e+00 : f32
    %21 = vector.broadcast %cst_9 : f32 to vector<8x1xf32>
    %22 = arith.maximumf %20, %21 : vector<8x1xf32>
    %23 = vector.broadcast %13 : vector<8x1xf32> to vector<8x64xf32>
    %24 = arith.subf %7, %23 : vector<8x64xf32>
    %cst_10 = arith.constant 9.99999974E-6 : f32
    %25 = vector.broadcast %cst_10 : f32 to vector<8x1xf32>
    %26 = arith.addf %22, %25 : vector<8x1xf32>
    %27 = math.rsqrt %26 : vector<8x1xf32>
    %28 = vector.broadcast %27 : vector<8x1xf32> to vector<8x64xf32>
    %29 = arith.mulf %24, %28 : vector<8x64xf32>
    %30 = vector.broadcast %8 : vector<1x64xf32> to vector<8x64xf32>
    %31 = arith.mulf %29, %30 : vector<8x64xf32>
    %32 = vector.broadcast %9 : vector<1x64xf32> to vector<8x64xf32>
    %33 = arith.addf %31, %32 : vector<8x64xf32>
    %cst_11 = arith.constant 0.000000e+00 : f32
    %34 = vector.broadcast %cst_11 : f32 to vector<8x64xf32>
    %35 = arith.maximumf %33, %34 : vector<8x64xf32>
    %36 = arith.truncf %35 : vector<8x64xf32> to vector<8x64xbf16>
    %c0_12 = arith.constant 0 : index
    %c0_13 = arith.constant 0 : index
    %37 = vector.load %arg3[%c0_12, %c0_13] : memref<64x128xbf16, #tpu.memory_space<vmem>>, vector<64x128xbf16>
    %cst_14 = arith.constant dense<0.000000e+00> : vector<8x128xf32>
    %38 = tpu.matmul %36, %37, %cst_14 {dimension_numbers = #tpu.dot_dimension_numbers<[1], [0], [0], [1], [0, 0, 1, 1], [], []>} : vector<8x64xbf16>, vector<64x128xbf16>, vector<8x128xf32> -> vector<8x128xf32>
    %39 = vector.extract_strided_slice %0 {offsets = [3, 0], sizes = [1, 128], strides = [1, 1]} : vector<16x256xf32> to vector<1x128xf32>
    %40 = vector.broadcast %39 : vector<1x128xf32> to vector<8x128xf32>
    %41 = arith.addf %38, %40 : vector<8x128xf32>
    %42 = vector.extract_strided_slice %0 {offsets = [4, 0], sizes = [1, 128], strides = [1, 1]} : vector<16x256xf32> to vector<1x128xf32>
    %43 = vector.extract_strided_slice %0 {offsets = [5, 0], sizes = [1, 128], strides = [1, 1]} : vector<16x256xf32> to vector<1x128xf32>
    %cst_15 = arith.constant dense<0.000000e+00> : vector<8xf32>
    %44 = vector.multi_reduction <add>, %41, %cst_15 [1] : vector<8x128xf32> to vector<8xf32>
    %45 = vector.shape_cast %44 : vector<8xf32> to vector<8x1xf32>
    %cst_16 = arith.constant 1.280000e+02 : f32
    %46 = vector.broadcast %cst_16 : f32 to vector<8x1xf32>
    %47 = arith.divf %45, %46 : vector<8x1xf32>
    %48 = arith.mulf %41, %41 : vector<8x128xf32>
    %cst_17 = arith.constant dense<0.000000e+00> : vector<8xf32>
    %49 = vector.multi_reduction <add>, %48, %cst_17 [1] : vector<8x128xf32> to vector<8xf32>
    %50 = vector.shape_cast %49 : vector<8xf32> to vector<8x1xf32>
    %cst_18 = arith.constant 1.280000e+02 : f32
    %51 = vector.broadcast %cst_18 : f32 to vector<8x1xf32>
    %52 = arith.divf %50, %51 : vector<8x1xf32>
    %53 = arith.mulf %47, %47 : vector<8x1xf32>
    %54 = arith.subf %52, %53 : vector<8x1xf32>
    %cst_19 = arith.constant 0.000000e+00 : f32
    %55 = vector.broadcast %cst_19 : f32 to vector<8x1xf32>
    %56 = arith.maximumf %54, %55 : vector<8x1xf32>
    %57 = vector.broadcast %47 : vector<8x1xf32> to vector<8x128xf32>
    %58 = arith.subf %41, %57 : vector<8x128xf32>
    %cst_20 = arith.constant 9.99999974E-6 : f32
    %59 = vector.broadcast %cst_20 : f32 to vector<8x1xf32>
    %60 = arith.addf %56, %59 : vector<8x1xf32>
    %61 = math.rsqrt %60 : vector<8x1xf32>
    %62 = vector.broadcast %61 : vector<8x1xf32> to vector<8x128xf32>
    %63 = arith.mulf %58, %62 : vector<8x128xf32>
    %64 = vector.broadcast %42 : vector<1x128xf32> to vector<8x128xf32>
    %65 = arith.mulf %63, %64 : vector<8x128xf32>
    %66 = vector.broadcast %43 : vector<1x128xf32> to vector<8x128xf32>
    %67 = arith.addf %65, %66 : vector<8x128xf32>
    %cst_21 = arith.constant 0.000000e+00 : f32
    %68 = vector.broadcast %cst_21 : f32 to vector<8x128xf32>
    %69 = arith.maximumf %67, %68 : vector<8x128xf32>
    %70 = arith.truncf %69 : vector<8x128xf32> to vector<8x128xbf16>
    %c0_22 = arith.constant 0 : index
    %c0_23 = arith.constant 0 : index
    %71 = vector.load %arg4[%c0_22, %c0_23] : memref<128x256xbf16, #tpu.memory_space<vmem>>, vector<128x256xbf16>
    %cst_24 = arith.constant dense<0.000000e+00> : vector<8x256xf32>
    %72 = tpu.matmul %70, %71, %cst_24 {dimension_numbers = #tpu.dot_dimension_numbers<[1], [0], [0], [1], [0, 0, 1, 1], [], []>} : vector<8x128xbf16>, vector<128x256xbf16>, vector<8x256xf32> -> vector<8x256xf32>
    %73 = vector.extract_strided_slice %0 {offsets = [6, 0], sizes = [1, 256], strides = [1, 1]} : vector<16x256xf32> to vector<1x256xf32>
    %74 = vector.broadcast %73 : vector<1x256xf32> to vector<8x256xf32>
    %75 = arith.addf %72, %74 : vector<8x256xf32>
    %76 = vector.extract_strided_slice %0 {offsets = [7, 0], sizes = [1, 256], strides = [1, 1]} : vector<16x256xf32> to vector<1x256xf32>
    %77 = vector.extract_strided_slice %0 {offsets = [8, 0], sizes = [1, 256], strides = [1, 1]} : vector<16x256xf32> to vector<1x256xf32>
    %cst_25 = arith.constant dense<0.000000e+00> : vector<8xf32>
    %78 = vector.multi_reduction <add>, %75, %cst_25 [1] : vector<8x256xf32> to vector<8xf32>
    %79 = vector.shape_cast %78 : vector<8xf32> to vector<8x1xf32>
    %cst_26 = arith.constant 2.560000e+02 : f32
    %80 = vector.broadcast %cst_26 : f32 to vector<8x1xf32>
    %81 = arith.divf %79, %80 : vector<8x1xf32>
    %82 = arith.mulf %75, %75 : vector<8x256xf32>
    %cst_27 = arith.constant dense<0.000000e+00> : vector<8xf32>
    %83 = vector.multi_reduction <add>, %82, %cst_27 [1] : vector<8x256xf32> to vector<8xf32>
    %84 = vector.shape_cast %83 : vector<8xf32> to vector<8x1xf32>
    %cst_28 = arith.constant 2.560000e+02 : f32
    %85 = vector.broadcast %cst_28 : f32 to vector<8x1xf32>
    %86 = arith.divf %84, %85 : vector<8x1xf32>
    %87 = arith.mulf %81, %81 : vector<8x1xf32>
    %88 = arith.subf %86, %87 : vector<8x1xf32>
    %cst_29 = arith.constant 0.000000e+00 : f32
    %89 = vector.broadcast %cst_29 : f32 to vector<8x1xf32>
    %90 = arith.maximumf %88, %89 : vector<8x1xf32>
    %91 = vector.broadcast %81 : vector<8x1xf32> to vector<8x256xf32>
    %92 = arith.subf %75, %91 : vector<8x256xf32>
    %cst_30 = arith.constant 9.99999974E-6 : f32
    %93 = vector.broadcast %cst_30 : f32 to vector<8x1xf32>
    %94 = arith.addf %90, %93 : vector<8x1xf32>
    %95 = math.rsqrt %94 : vector<8x1xf32>
    %96 = vector.broadcast %95 : vector<8x1xf32> to vector<8x256xf32>
    %97 = arith.mulf %92, %96 : vector<8x256xf32>
    %98 = vector.broadcast %76 : vector<1x256xf32> to vector<8x256xf32>
    %99 = arith.mulf %97, %98 : vector<8x256xf32>
    %100 = vector.broadcast %77 : vector<1x256xf32> to vector<8x256xf32>
    %101 = arith.addf %99, %100 : vector<8x256xf32>
    %cst_31 = arith.constant 0.000000e+00 : f32
    %102 = vector.broadcast %cst_31 : f32 to vector<8x256xf32>
    %103 = arith.maximumf %101, %102 : vector<8x256xf32>
    %104 = arith.truncf %103 : vector<8x256xf32> to vector<8x256xbf16>
    %c0_32 = arith.constant 0 : index
    %c0_33 = arith.constant 0 : index
    %105 = vector.load %arg5[%c0_32, %c0_33] : memref<256x8xbf16, #tpu.memory_space<vmem>>, vector<256x8xbf16>
    %cst_34 = arith.constant dense<0.000000e+00> : vector<8x8xf32>
    %106 = tpu.matmul %104, %105, %cst_34 {dimension_numbers = #tpu.dot_dimension_numbers<[1], [0], [0], [1], [0, 0, 1, 1], [], []>} : vector<8x256xbf16>, vector<256x8xbf16>, vector<8x8xf32> -> vector<8x8xf32>
    %107 = vector.extract_strided_slice %0 {offsets = [9, 0], sizes = [1, 8], strides = [1, 1]} : vector<16x256xf32> to vector<1x8xf32>
    %108 = vector.broadcast %107 : vector<1x8xf32> to vector<8x8xf32>
    %109 = arith.addf %106, %108 : vector<8x8xf32>
    %110 = vector.extract_strided_slice %0 {offsets = [10, 0], sizes = [1, 8], strides = [1, 1]} : vector<16x256xf32> to vector<1x8xf32>
    %111 = vector.extract_strided_slice %0 {offsets = [11, 0], sizes = [1, 8], strides = [1, 1]} : vector<16x256xf32> to vector<1x8xf32>
    %112 = vector.extract_strided_slice %0 {offsets = [12, 0], sizes = [1, 8], strides = [1, 1]} : vector<16x256xf32> to vector<1x8xf32>
    %113 = vector.broadcast %110 : vector<1x8xf32> to vector<8x8xf32>
    %114 = arith.mulf %109, %113 : vector<8x8xf32>
    %115 = math.tanh %114 : vector<8x8xf32>
    %116 = vector.broadcast %111 : vector<1x8xf32> to vector<8x8xf32>
    %117 = arith.mulf %115, %116 : vector<8x8xf32>
    %118 = vector.broadcast %112 : vector<1x8xf32> to vector<8x8xf32>
    %119 = arith.addf %117, %118 : vector<8x8xf32>
    %c0_35 = arith.constant 0 : index
    %c0_36 = arith.constant 0 : index
    %120 = vector.load %arg7[%c0_35, %c0_36] : memref<8x8xf32, #tpu.memory_space<vmem>>, vector<8x8xf32>
    tpu.vector_store %arg7[%c0_35, %c0_36], %119 {strides = array<i32>} : memref<8x8xf32, #tpu.memory_space<vmem>>, vector<8x8xf32>,
    return
  }
  func.func @transform_0(%arg0: i32) -> (i32, i32) {
    %c0_i32 = arith.constant 0 : i32
    %c0_i32_0 = arith.constant 0 : i32
    return %arg0, %c0_i32 : i32, i32
  }
  func.func @transform_1(%arg0: i32) -> (i32, i32) {
    %c0_i32 = arith.constant 0 : i32
    %c0_i32_0 = arith.constant 0 : i32
    %c0_i32_1 = arith.constant 0 : i32
    return %c0_i32, %c0_i32_0 : i32, i32
  }
  func.func @transform_2(%arg0: i32) -> (i32, i32) {
    %c0_i32 = arith.constant 0 : i32
    %c0_i32_0 = arith.constant 0 : i32
    %c0_i32_1 = arith.constant 0 : i32
    return %c0_i32, %c0_i32_0 : i32, i32
  }
  func.func @transform_3(%arg0: i32) -> (i32, i32) {
    %c0_i32 = arith.constant 0 : i32
    %c0_i32_0 = arith.constant 0 : i32
    %c0_i32_1 = arith.constant 0 : i32
    return %c0_i32, %c0_i32_0 : i32, i32
  }
  func.func @transform_4(%arg0: i32) -> (i32, i32) {
    %c0_i32 = arith.constant 0 : i32
    %c0_i32_0 = arith.constant 0 : i32
    %c0_i32_1 = arith.constant 0 : i32
    return %c0_i32, %c0_i32_0 : i32, i32
  }
  func.func @transform_5(%arg0: i32) -> (i32, i32) {
    %c0_i32 = arith.constant 0 : i32
    %c0_i32_0 = arith.constant 0 : i32
    %c0_i32_1 = arith.constant 0 : i32
    return %c0_i32, %c0_i32_0 : i32, i32
  }
  func.func @transform_6(%arg0: i32) -> (i32, i32) {
    %c0_i32 = arith.constant 0 : i32
    %c0_i32_0 = arith.constant 0 : i32
    return %arg0, %c0_i32 : i32, i32
  }
}

</mosaic_0001>

<llo_original>
// kernel: tpu_custom_call.1
$region0: #{tpu_custom_call.1}
  #allocation0 [shape = 'u32[]', space=smem, size = 0x4, offset = 0x4, fixed_abs, tag = 'smem constant byte address 0x4 - core index']
  #allocation1 [shape = 'u32[144,128]{1,0:T(1,128)}', space=vmem, size = 0x12000, scoped, tag = 'internal scratch']
  %s0 = inlined_call_operand.vmem [shape: f32[8,11], index: 0, kind: input, shape index: {}]
  %s1 = inlined_call_operand.hbm [shape: bf16[11,64], index: 1, kind: input, shape index: {}]
  %s2 = inlined_call_operand.hbm [shape: bf16[64,128], index: 2, kind: input, shape index: {}]
  %s3 = inlined_call_operand.vmem [shape: bf16[128,256], index: 3, kind: input, shape index: {}]
  %s4 = inlined_call_operand.vmem [shape: bf16[256,8], index: 4, kind: input, shape index: {}]
  %s5 = inlined_call_operand.hbm [shape: f32[16,256], index: 5, kind: input, shape index: {}]
  %s6 = inlined_call_operand.hbm [shape: f32[8,8], index: 6, kind: output, shape index: {}]
  %s7 = sld [smem:[#allocation0]]
  $region46: #{tpu_custom_call.1} parent=0
    _
  %s9 = ssub.s32 1, %s7
  %s10 = scalar_select 0, %s9, %s7
  $region1: #{tpu_custom_call.1} parent=0
    #allocation2 [shape = 'u8[4096]{0}', space=vmem, size = 0x1000, scoped, tag = 'input window, operand 1, single buffered']
    #allocation3 [shape = 's32[1]{0}', space=sflag, size = 0x4, scoped, tag = 'scoped memory for tpu_custom_call.1']
    #allocation4 [shape = 's32[1]{0}', space=sflag, size = 0x4, scoped, tag = 'scoped memory for tpu_custom_call.1']
    #allocation5 [shape = 'u8[16384]{0}', space=vmem, size = 0x4000, scoped, tag = 'input window, operand 2, single buffered']
    #allocation6 [shape = 's32[1]{0}', space=sflag, size = 0x4, scoped, tag = 'scoped memory for tpu_custom_call.1']
    #allocation7 [shape = 'u8[16384]{0}', space=vmem, size = 0x4000, scoped, tag = 'input window, operand 5, single buffered']
    #allocation8 [shape = 'u8[4096]{0}', space=vmem, size = 0x1000, scoped, tag = 'output window, operand 0, single buffered']
    %11 = vsyncpa [#allocation3], 0
    %12 = vsyncpa [#allocation6], 0
    %13 = vsyncpa [#allocation4], 0
    // Predicated region
    $region2: #{tpu_custom_call.1} parent=1 // pred_check
      _
    $region3: #{tpu_custom_call.1} parent=1 // pred_check_branch
      %15 = sbr.rel (0) target = $region5
    $region4: #{tpu_custom_call.1} parent=1 // pred_region
      _
    $region5: #{tpu_custom_call.1} parent=1 // pred_fallthru
      _
    // Predicated region
    $region6: #{tpu_custom_call.1} parent=1 // pred_check
      _
    $region7: #{tpu_custom_call.1} parent=1 // pred_check_branch
      %17 = sbr.rel (0) target = $region9
    $region8: #{tpu_custom_call.1} parent=1 // pred_region
      %s19 = ssub.s32 128, 128
      %20 = vsyncadd [#allocation3], %s19
      %s21 = sshll.u32 [#allocation2], 4
      %s22 = int_to_ptr.vmem [resolvable:$true] %s21
      %27 = dma.hbm_to_vmem [thread:$0]  %s1, 128, %s22, [#allocation3], 64, 64, 4
    $region9: #{tpu_custom_call.1} parent=1 // pred_fallthru
      _
    // Predicated region
    $region10: #{tpu_custom_call.1} parent=1 // pred_check
      _
    $region11: #{tpu_custom_call.1} parent=1 // pred_check_branch
      %29 = sbr.rel (0) target = $region13
    $region12: #{tpu_custom_call.1} parent=1 // pred_region
      %s31 = ssub.s32 512, 512
      %32 = vsyncadd [#allocation6], %s31
      %s33 = sshll.u32 [#allocation5], 4
      %s34 = int_to_ptr.vmem [resolvable:$true] %s33
      %39 = dma.hbm_to_vmem [thread:$0]  %s2, 512, %s34, [#allocation6], 64, 64, 4
    $region13: #{tpu_custom_call.1} parent=1 // pred_fallthru
      _
    // Predicated region
    $region14: #{tpu_custom_call.1} parent=1 // pred_check
      _
    $region15: #{tpu_custom_call.1} parent=1 // pred_check_branch
      %41 = sbr.rel (0) target = $region17
    $region16: #{tpu_custom_call.1} parent=1 // pred_region
      _
    $region17: #{tpu_custom_call.1} parent=1 // pred_fallthru
      _
    // Predicated region
    $region18: #{tpu_custom_call.1} parent=1 // pred_check
      _
    $region19: #{tpu_custom_call.1} parent=1 // pred_check_branch
      %43 = sbr.rel (0) target = $region21
    $region20: #{tpu_custom_call.1} parent=1 // pred_region
      _
    $region21: #{tpu_custom_call.1} parent=1 // pred_fallthru
      _
    // Predicated region
    $region22: #{tpu_custom_call.1} parent=1 // pred_check
      _
    $region23: #{tpu_custom_call.1} parent=1 // pred_check_branch
      %45 = sbr.rel (0) target = $region25
    $region24: #{tpu_custom_call.1} parent=1 // pred_region
      %s47 = ssub.s32 512, 512
      %48 = vsyncadd [#allocation6], %s47
      %s49 = sshll.u32 [#allocation7], 4
      %s50 = int_to_ptr.vmem [resolvable:$true] %s49
      %55 = dma.hbm_to_vmem [thread:$0]  %s5, 512, %s50, [#allocation6], 256, 256, 16
    $region25: #{tpu_custom_call.1} parent=1 // pred_fallthru
      _
    // Predicated region
    $region26: #{tpu_custom_call.1} parent=1 // pred_check
      _
    $region27: #{tpu_custom_call.1} parent=1 // pred_check_branch
      %57 = sbr.rel (0) target = $region29
    $region28: #{tpu_custom_call.1} parent=1 // pred_region
      %58 = dma.done [#allocation3], 128
    $region29: #{tpu_custom_call.1} parent=1 // pred_fallthru
      _
    // Predicated region
    $region30: #{tpu_custom_call.1} parent=1 // pred_check
      _
    $region31: #{tpu_custom_call.1} parent=1 // pred_check_branch
      %60 = sbr.rel (0) target = $region33
    $region32: #{tpu_custom_call.1} parent=1 // pred_region
      %61 = dma.done [#allocation6], 512
    $region33: #{tpu_custom_call.1} parent=1 // pred_fallthru
      _
    // Predicated region
    $region34: #{tpu_custom_call.1} parent=1 // pred_check
      _
    $region35: #{tpu_custom_call.1} parent=1 // pred_check_branch
      %63 = sbr.rel (0) target = $region37
    $region36: #{tpu_custom_call.1} parent=1 // pred_region
      %64 = dma.done [#allocation6], 512
    $region37: #{tpu_custom_call.1} parent=1 // pred_fallthru
      _
    %v66 = vld [vmem:[#allocation7] sm:$0xff]
    %v67 = vld [vmem:[#allocation7 + $0x8] sm:$0xff]
    %v68 = vld [vmem:[#allocation7 + $0x10] sm:$0xff]
    %v69 = vld [vmem:[#allocation7 + $0x18] sm:$0xff]
    %v70 = vld [vmem:[%s0] sm:$0xff]
    %v71 = vpack.c.bf16 %v70, %v70
    %v72 = vld [vmem:[#allocation2] sm:$0xf]
    %v73 = vld [vmem:[#allocation2 + $0x4] sm:$0x3]
    %v74 = vlaneseq
    %v75 = vshrl.u32 %v74, 7
    %v76 = vsub.s32 0, %v75
    %v77 = vrot.slane %v66, %v76
    %v80 = vunpack.c.l.b16 %v72
    %v81 = vunpack.c.l.b16 %v73
    %v82 = vpack.c.b16 %v81, %v80
    %vm83 = vcmask 89088
    %v85 = vsel %vm83, %v71, 0
    %vm87 = vcmask 1044480
    %vm88 = vcmask 1045504
    %v89 = vsel %vm87, 4294967295, 65535
    %v90 = vsel %vm88, %v89, 0
    %v92 = vand.u32 %v82, %v90
    %94 = vmatprep.subr.bf16.mxu0 0
    %95 = vmatpush1.bf16.msra.mxu0 0
    %96 = vmatprep.subr.bf16.mxu0 0
    %97 = vmatpush1.bf16.msra.mxu0 0
    %98 = vmatprep.subr.bf16.mxu0 0
    %99 = vmatpush1.bf16.msra.mxu0 0
    %100 = vmatprep.subr.bf16.mxu0 0
    %101 = vmatpush1.bf16.msra.mxu0 0
    %102 = vmatprep.subr.bf16.mxu0 0
    %103 = vmatpush1.bf16.msra.mxu0 0
    %104 = vmatprep.subr.bf16.mxu0 0
    %105 = vmatpush1.bf16.msra.mxu0 0
    %106 = vmatprep.subr.bf16.mxu0 0
    %107 = vmatpush1.bf16.msra.mxu0 0
    %108 = vmatprep.subr.bf16.mxu0 0
    %109 = vmatpush1.bf16.msra.mxu0 %v92
    %110 = vmatprep.subr.bf16.mxu0 0
    %111 = vmatpush2.bf16.msra.mxu0 0
    %112 = vmatprep.subr.bf16.mxu0 0
    %113 = vmatpush2.bf16.msra.mxu0 0
    %114 = vmatprep.subr.bf16.mxu0 0
    %115 = vmatpush2.bf16.msra.mxu0 0
    %116 = vmatprep.subr.bf16.mxu0 0
    %117 = vmatpush2.bf16.msra.mxu0 0
    %118 = vmatprep.subr.bf16.mxu0 0
    %119 = vmatpush2.bf16.msra.mxu0 0
    %120 = vmatprep.subr.bf16.mxu0 0
    %121 = vmatpush2.bf16.msra.mxu0 0
    %122 = vmatprep.subr.bf16.mxu0 0
    %123 = vmatpush2.bf16.msra.mxu0 0
    %124 = vmatprep.subr.bf16.mxu0 0
    %125 = vmatpush2.bf16.msra.mxu0 0
    %126 = vmatprep.mubr.bf16.mxu0 0
    %127 = vmatmul.mubr.bf16.gmra.mxu0 %v85
    %v128 = vpop.f32.mrf.mxu0
    %v129 = vadd.f32 %v77, %v128
    %v130 = vpop.f32.mrf.mxu0
    %v131 = vpop.f32.mrf.mxu0
    %v132 = vpop.f32.mrf.mxu0
    %133 = vdwg.mxu0
    %vm134 = vcmask 523264
    %v135 = vsel %vm134, %v129, 0.0
    %136 = vadd.xlane.f32.xlu0 %v135
    %v137 = vpop.xlane.xlu0 %136
    %v138 = vrcp.pop 64.0
    %v139 = vmul.f32 %v137, %v138
    %v140 = vmul.f32 %v129, %v129
    %v141 = vsel %vm134, %v140, 0.0
    %142 = vadd.xlane.f32.xlu0 %v141
    %v143 = vpop.xlane.xlu0 %142
    %v144 = vmul.f32 %v143, %v138
    %v145 = vmul.f32 %v139, %v139
    %v146 = vsub.f32 %v144, %v145
    %v147 = vmax.f32 %v146, 0.0
    %v148 = vsub.f32 %v129, %v139
    %v149 = vadd.f32 %v147, 1e-05
    %v150 = vrsqrt.pop %v149
    %v151 = vmul.f32 %v148, %v150
    %v152 = vlaneseq
    %v153 = vshrl.u32 %v152, 7
    %v154 = vsub.s32 1, %v153
    %v155 = vrot.slane %v66, %v154
    %v156 = vmul.f32 %v151, %v155
    %v157 = vlaneseq
    %v158 = vshrl.u32 %v157, 7
    %v159 = vsub.s32 2, %v158
    %v160 = vrot.slane %v66, %v159
    %v161 = vadd.f32 %v156, %v160
    %v162 = vmax.f32 %v161, 0.0
    %v163 = vpack.c.bf16 %v162, %v162
    %v164 = vld [vmem:[#allocation5] sm:$0xf]
    %v165 = vld [vmem:[#allocation5 + $0x4] sm:$0xf]
    %v166 = vld [vmem:[#allocation5 + $0x8] sm:$0xf]
    %v167 = vld [vmem:[#allocation5 + $0xc] sm:$0xf]
    %v168 = vld [vmem:[#allocation5 + $0x10] sm:$0xf]
    %v169 = vld [vmem:[#allocation5 + $0x14] sm:$0xf]
    %v170 = vld [vmem:[#allocation5 + $0x18] sm:$0xf]
    %v171 = vld [vmem:[#allocation5 + $0x1c] sm:$0xf]
    %v172 = vlaneseq
    %v173 = vshrl.u32 %v172, 7
    %v174 = vsub.s32 3, %v173
    %v175 = vrot.slane %v66, %v174
    %v184 = vunpack.c.l.b16 %v164
    %v185 = vunpack.c.l.b16 %v165
    %v186 = vunpack.c.l.b16 %v166
    %v187 = vunpack.c.l.b16 %v167
    %v188 = vunpack.c.l.b16 %v168
    %v189 = vunpack.c.l.b16 %v169
    %v190 = vunpack.c.l.b16 %v170
    %v191 = vunpack.c.l.b16 %v171
    %v192 = vpack.c.b16 %v185, %v184
    %v193 = vpack.c.b16 %v187, %v186
    %v194 = vpack.c.b16 %v189, %v188
    %v195 = vpack.c.b16 %v191, %v190
    %v201 = vsel %vm134, %v163, 0
    %203 = vmatprep.subr.bf16.mxu0 0
    %204 = vmatpush1.bf16.msra.mxu0 0
    %205 = vmatprep.subr.bf16.mxu0 0
    %206 = vmatpush1.bf16.msra.mxu0 0
    %207 = vmatprep.subr.bf16.mxu0 0
    %208 = vmatpush1.bf16.msra.mxu0 0
    %209 = vmatprep.subr.bf16.mxu0 0
    %210 = vmatpush1.bf16.msra.mxu0 0
    %211 = vmatprep.subr.bf16.mxu0 0
    %212 = vmatpush1.bf16.msra.mxu0 %v195
    %213 = vmatprep.subr.bf16.mxu0 0
    %214 = vmatpush1.bf16.msra.mxu0 %v194
    %215 = vmatprep.subr.bf16.mxu0 0
    %216 = vmatpush1.bf16.msra.mxu0 %v193
    %217 = vmatprep.subr.bf16.mxu0 0
    %218 = vmatpush1.bf16.msra.mxu0 %v192
    %219 = vmatprep.subr.bf16.mxu0 0
    %220 = vmatpush2.bf16.msra.mxu0 0
    %221 = vmatprep.subr.bf16.mxu0 0
    %222 = vmatpush2.bf16.msra.mxu0 0
    %223 = vmatprep.subr.bf16.mxu0 0
    %224 = vmatpush2.bf16.msra.mxu0 0
    %225 = vmatprep.subr.bf16.mxu0 0
    %226 = vmatpush2.bf16.msra.mxu0 0
    %227 = vmatprep.subr.bf16.mxu0 0
    %228 = vmatpush2.bf16.msra.mxu0 0
    %229 = vmatprep.subr.bf16.mxu0 0
    %230 = vmatpush2.bf16.msra.mxu0 0
    %231 = vmatprep.subr.bf16.mxu0 0
    %232 = vmatpush2.bf16.msra.mxu0 0
    %233 = vmatprep.subr.bf16.mxu0 0
    %234 = vmatpush2.bf16.msra.mxu0 0
    %235 = vmatprep.mubr.bf16.mxu0 0
    %236 = vmatmul.mubr.bf16.gmra.mxu0 %v201
    %v237 = vpop.f32.mrf.mxu0
    %v238 = vadd.f32 %v175, %v237
    %v239 = vpop.f32.mrf.mxu0
    %v240 = vpop.f32.mrf.mxu0
    %v241 = vpop.f32.mrf.mxu0
    %242 = vdwg.mxu0
    %243 = vadd.xlane.f32.xlu0 %v238
    %v244 = vpop.xlane.xlu0 %243
    %v245 = vrcp.pop 128.0
    %v246 = vmul.f32 %v244, %v245
    %v247 = vmul.f32 %v238, %v238
    %248 = vadd.xlane.f32.xlu0 %v247
    %v249 = vpop.xlane.xlu0 %248
    %v250 = vmul.f32 %v249, %v245
    %v251 = vmul.f32 %v246, %v246
    %v252 = vsub.f32 %v250, %v251
    %v253 = vmax.f32 %v252, 0.0
    %v254 = vsub.f32 %v238, %v246
    %v255 = vadd.f32 %v253, 1e-05
    %v256 = vrsqrt.pop %v255
    %v257 = vmul.f32 %v254, %v256
    %v258 = vlaneseq
    %v259 = vshrl.u32 %v258, 7
    %v260 = vsub.s32 4, %v259
    %v261 = vrot.slane %v66, %v260
    %v262 = vmul.f32 %v257, %v261
    %v263 = vlaneseq
    %v264 = vshrl.u32 %v263, 7
    %v265 = vsub.s32 5, %v264
    %v266 = vrot.slane %v66, %v265
    %v267 = vadd.f32 %v262, %v266
    %v268 = vmax.f32 %v267, 0.0
    %v269 = vpack.c.bf16 %v268, %v268
    %v270 = vld [vmem:[%s3] sm:$0xff]
    %v271 = vld [vmem:[%s3 + $0x8] sm:$0xff]
    %v272 = vld [vmem:[%s3 + $0x10] sm:$0xff]
    %v273 = vld [vmem:[%s3 + $0x18] sm:$0xff]
    %v274 = vld [vmem:[%s3 + $0x20] sm:$0xff]
    %v275 = vld [vmem:[%s3 + $0x28] sm:$0xff]
    %v276 = vld [vmem:[%s3 + $0x30] sm:$0xff]
    %v277 = vld [vmem:[%s3 + $0x38] sm:$0xff]
    %v278 = vld [vmem:[%s3 + $0x40] sm:$0xff]
    %v279 = vld [vmem:[%s3 + $0x48] sm:$0xff]
    %v280 = vld [vmem:[%s3 + $0x50] sm:$0xff]
    %v281 = vld [vmem:[%s3 + $0x58] sm:$0xff]
    %v282 = vld [vmem:[%s3 + $0x60] sm:$0xff]
    %v283 = vld [vmem:[%s3 + $0x68] sm:$0xff]
    %v284 = vld [vmem:[%s3 + $0x70] sm:$0xff]
    %v285 = vld [vmem:[%s3 + $0x78] sm:$0xff]
    %v286 = vlaneseq
    %v287 = vshrl.u32 %v286, 7
    %v288 = vsub.s32 6, %v287
    %v289 = vrot.slane %v66, %v288
    %v290 = vlaneseq
    %v291 = vshrl.u32 %v290, 7
    %v292 = vsub.s32 6, %v291
    %v293 = vrot.slane %v67, %v292
    %v310 = vunpack.c.l.b16 %v270
    %v311 = vunpack.c.h.b16 %v270
    %v312 = vunpack.c.l.b16 %v271
    %v313 = vunpack.c.h.b16 %v271
    %v314 = vunpack.c.l.b16 %v272
    %v315 = vunpack.c.h.b16 %v272
    %v316 = vunpack.c.l.b16 %v273
    %v317 = vunpack.c.h.b16 %v273
    %v318 = vunpack.c.l.b16 %v274
    %v319 = vunpack.c.h.b16 %v274
    %v320 = vunpack.c.l.b16 %v275
    %v321 = vunpack.c.h.b16 %v275
    %v322 = vunpack.c.l.b16 %v276
    %v323 = vunpack.c.h.b16 %v276
    %v324 = vunpack.c.l.b16 %v277
    %v325 = vunpack.c.h.b16 %v277
    %v326 = vunpack.c.l.b16 %v278
    %v327 = vunpack.c.h.b16 %v278
    %v328 = vunpack.c.l.b16 %v279
    %v329 = vunpack.c.h.b16 %v279
    %v330 = vunpack.c.l.b16 %v280
    %v331 = vunpack.c.h.b16 %v280
    %v332 = vunpack.c.l.b16 %v281
    %v333 = vunpack.c.h.b16 %v281
    %v334 = vunpack.c.l.b16 %v282
    %v335 = vunpack.c.h.b16 %v282
    %v336 = vunpack.c.l.b16 %v283
    %v337 = vunpack.c.h.b16 %v283
    %v338 = vunpack.c.l.b16 %v284
    %v339 = vunpack.c.h.b16 %v284
    %v340 = vunpack.c.l.b16 %v285
    %v341 = vunpack.c.h.b16 %v285
    %v342 = vpack.c.b16 %v312, %v310
    %v343 = vpack.c.b16 %v313, %v311
    %v344 = vpack.c.b16 %v316, %v314
    %v345 = vpack.c.b16 %v317, %v315
    %v346 = vpack.c.b16 %v320, %v318
    %v347 = vpack.c.b16 %v321, %v319
    %v348 = vpack.c.b16 %v324, %v322
    %v349 = vpack.c.b16 %v325, %v323
    %v350 = vpack.c.b16 %v328, %v326
    %v351 = vpack.c.b16 %v329, %v327
    %v352 = vpack.c.b16 %v332, %v330
    %v353 = vpack.c.b16 %v333, %v331
    %v354 = vpack.c.b16 %v336, %v334
    %v355 = vpack.c.b16 %v337, %v335
    %v356 = vpack.c.b16 %v340, %v338
    %v357 = vpack.c.b16 %v341, %v339
    %374 = vmatprep.subr.bf16.mxu0 %v357
    %375 = vmatpush1.bf16.msra.mxu0 %v356
    %376 = vmatprep.subr.bf16.mxu0 %v355
    %377 = vmatpush1.bf16.msra.mxu0 %v354
    %378 = vmatprep.subr.bf16.mxu0 %v353
    %379 = vmatpush1.bf16.msra.mxu0 %v352
    %380 = vmatprep.subr.bf16.mxu0 %v351
    %381 = vmatpush1.bf16.msra.mxu0 %v350
    %382 = vmatprep.subr.bf16.mxu0 %v349
    %383 = vmatpush1.bf16.msra.mxu0 %v348
    %384 = vmatprep.subr.bf16.mxu0 %v347
    %385 = vmatpush1.bf16.msra.mxu0 %v346
    %386 = vmatprep.subr.bf16.mxu0 %v345
    %387 = vmatpush1.bf16.msra.mxu0 %v344
    %388 = vmatprep.subr.bf16.mxu0 %v343
    %389 = vmatpush1.bf16.msra.mxu0 %v342
    %390 = vmatprep.subr.bf16.mxu0 0
    %391 = vmatpush2.bf16.msra.mxu0 0
    %392 = vmatprep.subr.bf16.mxu0 0
    %393 = vmatpush2.bf16.msra.mxu0 0
    %394 = vmatprep.subr.bf16.mxu0 0
    %395 = vmatpush2.bf16.msra.mxu0 0
    %396 = vmatprep.subr.bf16.mxu0 0
    %397 = vmatpush2.bf16.msra.mxu0 0
    %398 = vmatprep.subr.bf16.mxu0 0
    %399 = vmatpush2.bf16.msra.mxu0 0
    %400 = vmatprep.subr.bf16.mxu0 0
    %401 = vmatpush2.bf16.msra.mxu0 0
    %402 = vmatprep.subr.bf16.mxu0 0
    %403 = vmatpush2.bf16.msra.mxu0 0
    %404 = vmatprep.subr.bf16.mxu0 0
    %405 = vmatpush2.bf16.msra.mxu0 0
    %406 = vmatprep.mubr.bf16.mxu0 0
    %407 = vmatmul.mubr.bf16.gmra.mxu0 %v269
    %v408 = vpop.f32.mrf.mxu0
    %v409 = vadd.f32 %v289, %v408
    %v410 = vpop.f32.mrf.mxu0
    %v411 = vadd.f32 %v293, %v410
    %v412 = vpop.f32.mrf.mxu0
    %v413 = vpop.f32.mrf.mxu0
    %414 = vdwg.mxu0
    %v415 = vadd.f32 %v409, %v411
    %416 = vadd.xlane.f32.xlu0 %v415
    %v417 = vpop.xlane.xlu0 %416
    %v418 = vrcp.pop 256.0
    %v419 = vmul.f32 %v417, %v418
    %v420 = vmul.f32 %v409, %v409
    %v421 = vmul.f32 %v411, %v411
    %v422 = vadd.f32 %v420, %v421
    %423 = vadd.xlane.f32.xlu0 %v422
    %v424 = vpop.xlane.xlu0 %423
    %v425 = vmul.f32 %v424, %v418
    %v426 = vmul.f32 %v419, %v419
    %v427 = vsub.f32 %v425, %v426
    %v428 = vmax.f32 %v427, 0.0
    %v429 = vsub.f32 %v409, %v419
    %v430 = vsub.f32 %v411, %v419
    %v431 = vadd.f32 %v428, 1e-05
    %v432 = vrsqrt.pop %v431
    %v433 = vmul.f32 %v429, %v432
    %v434 = vmul.f32 %v430, %v432
    %v435 = vlaneseq
    %v436 = vshrl.u32 %v435, 7
    %v437 = vsub.s32 7, %v436
    %v438 = vrot.slane %v66, %v437
    %v439 = vlaneseq
    %v440 = vshrl.u32 %v439, 7
    %v441 = vsub.s32 7, %v440
    %v442 = vrot.slane %v67, %v441
    %v443 = vmul.f32 %v433, %v438
    %v444 = vmul.f32 %v434, %v442
    %v445 = vlaneseq
    %v446 = vshrl.u32 %v445, 7
    %v447 = vsub.s32 0, %v446
    %v448 = vrot.slane %v68, %v447
    %v449 = vlaneseq
    %v450 = vshrl.u32 %v449, 7
    %v451 = vsub.s32 0, %v450
    %v452 = vrot.slane %v69, %v451
    %v453 = vadd.f32 %v443, %v448
    %v454 = vadd.f32 %v444, %v452
    %v455 = vmax.f32 %v453, 0.0
    %v456 = vmax.f32 %v454, 0.0
    %v457 = vpack.c.bf16 %v455, %v455
    %v458 = vpack.c.bf16 %v456, %v456
    %v459 = vld [vmem:[%s4] sm:$0xf]
    %v460 = vld [vmem:[%s4 + $0x4] sm:$0xf]
    %v461 = vld [vmem:[%s4 + $0x8] sm:$0xf]
    %v462 = vld [vmem:[%s4 + $0xc] sm:$0xf]
    %v463 = vld [vmem:[%s4 + $0x10] sm:$0xf]
    %v464 = vld [vmem:[%s4 + $0x14] sm:$0xf]
    %v465 = vld [vmem:[%s4 + $0x18] sm:$0xf]
    %v466 = vld [vmem:[%s4 + $0x1c] sm:$0xf]
    %v467 = vld [vmem:[%s4 + $0x20] sm:$0xf]
    %v468 = vld [vmem:[%s4 + $0x24] sm:$0xf]
    %v469 = vld [vmem:[%s4 + $0x28] sm:$0xf]
    %v470 = vld [vmem:[%s4 + $0x2c] sm:$0xf]
    %v471 = vld [vmem:[%s4 + $0x30] sm:$0xf]
    %v472 = vld [vmem:[%s4 + $0x34] sm:$0xf]
    %v473 = vld [vmem:[%s4 + $0x38] sm:$0xf]
    %v474 = vld [vmem:[%s4 + $0x3c] sm:$0xf]
    %v475 = vld [vmem:[%s4 + $0x40] sm:$0xf]
    %v476 = vld [vmem:[%s4 + $0x44] sm:$0xf]
    %v477 = vld [vmem:[%s4 + $0x48] sm:$0xf]
    %v478 = vld [vmem:[%s4 + $0x4c] sm:$0xf]
    %v479 = vld [vmem:[%s4 + $0x50] sm:$0xf]
    %v480 = vld [vmem:[%s4 + $0x54] sm:$0xf]
    %v481 = vld [vmem:[%s4 + $0x58] sm:$0xf]
    %v482 = vld [vmem:[%s4 + $0x5c] sm:$0xf]
    %v483 = vld [vmem:[%s4 + $0x60] sm:$0xf]
    %v484 = vld [vmem:[%s4 + $0x64] sm:$0xf]
    %v485 = vld [vmem:[%s4 + $0x68] sm:$0xf]
    %v486 = vld [vmem:[%s4 + $0x6c] sm:$0xf]
    %v487 = vld [vmem:[%s4 + $0x70] sm:$0xf]
    %v488 = vld [vmem:[%s4 + $0x74] sm:$0xf]
    %v489 = vld [vmem:[%s4 + $0x78] sm:$0xf]
    %v490 = vld [vmem:[%s4 + $0x7c] sm:$0xf]
    %v491 = vlaneseq
    %v492 = vshrl.u32 %v491, 7
    %v493 = vsub.s32 1, %v492
    %v494 = vrot.slane %v68, %v493
    %v527 = vunpack.c.l.b16 %v459
    %v528 = vunpack.c.l.b16 %v460
    %v529 = vunpack.c.l.b16 %v461
    %v530 = vunpack.c.l.b16 %v462
    %v531 = vunpack.c.l.b16 %v463
    %v532 = vunpack.c.l.b16 %v464
    %v533 = vunpack.c.l.b16 %v465
    %v534 = vunpack.c.l.b16 %v466
    %v535 = vunpack.c.l.b16 %v467
    %v536 = vunpack.c.l.b16 %v468
    %v537 = vunpack.c.l.b16 %v469
    %v538 = vunpack.c.l.b16 %v470
    %v539 = vunpack.c.l.b16 %v471
    %v540 = vunpack.c.l.b16 %v472
    %v541 = vunpack.c.l.b16 %v473
    %v542 = vunpack.c.l.b16 %v474
    %v543 = vunpack.c.l.b16 %v475
    %v544 = vunpack.c.l.b16 %v476
    %v545 = vunpack.c.l.b16 %v477
    %v546 = vunpack.c.l.b16 %v478
    %v547 = vunpack.c.l.b16 %v479
    %v548 = vunpack.c.l.b16 %v480
    %v549 = vunpack.c.l.b16 %v481
    %v550 = vunpack.c.l.b16 %v482
    %v551 = vunpack.c.l.b16 %v483
    %v552 = vunpack.c.l.b16 %v484
    %v553 = vunpack.c.l.b16 %v485
    %v554 = vunpack.c.l.b16 %v486
    %v555 = vunpack.c.l.b16 %v487
    %v556 = vunpack.c.l.b16 %v488
    %v557 = vunpack.c.l.b16 %v489
    %v558 = vunpack.c.l.b16 %v490
    %v559 = vpack.c.b16 %v528, %v527
    %v560 = vpack.c.b16 %v530, %v529
    %v561 = vpack.c.b16 %v532, %v531
    %v562 = vpack.c.b16 %v534, %v533
    %v563 = vpack.c.b16 %v536, %v535
    %v564 = vpack.c.b16 %v538, %v537
    %v565 = vpack.c.b16 %v540, %v539
    %v566 = vpack.c.b16 %v542, %v541
    %v567 = vpack.c.b16 %v544, %v543
    %v568 = vpack.c.b16 %v546, %v545
    %v569 = vpack.c.b16 %v548, %v547
    %v570 = vpack.c.b16 %v550, %v549
    %v571 = vpack.c.b16 %v552, %v551
    %v572 = vpack.c.b16 %v554, %v553
    %v573 = vpack.c.b16 %v556, %v555
    %v574 = vpack.c.b16 %v558, %v557
    %591 = vmatprep.subr.bf16.mxu0 0
    %592 = vmatpush1.bf16.msra.mxu0 %v566
    %593 = vmatprep.subr.bf16.mxu0 0
    %594 = vmatpush1.bf16.msra.mxu0 %v565
    %595 = vmatprep.subr.bf16.mxu0 0
    %596 = vmatpush1.bf16.msra.mxu0 %v564
    %597 = vmatprep.subr.bf16.mxu0 0
    %598 = vmatpush1.bf16.msra.mxu0 %v563
    %599 = vmatprep.subr.bf16.mxu0 0
    %600 = vmatpush1.bf16.msra.mxu0 %v562
    %601 = vmatprep.subr.bf16.mxu0 0
    %602 = vmatpush1.bf16.msra.mxu0 %v561
    %603 = vmatprep.subr.bf16.mxu0 0
    %604 = vmatpush1.bf16.msra.mxu0 %v560
    %605 = vmatprep.subr.bf16.mxu0 0
    %606 = vmatpush1.bf16.msra.mxu0 %v559
    %607 = vmatprep.subr.bf16.mxu0 0
    %608 = vmatpush2.bf16.msra.mxu0 %v574
    %609 = vmatprep.subr.bf16.mxu0 0
    %610 = vmatpush2.bf16.msra.mxu0 %v573
    %611 = vmatprep.subr.bf16.mxu0 0
    %612 = vmatpush2.bf16.msra.mxu0 %v572
    %613 = vmatprep.subr.bf16.mxu0 0
    %614 = vmatpush2.bf16.msra.mxu0 %v571
    %615 = vmatprep.subr.bf16.mxu0 0
    %616 = vmatpush2.bf16.msra.mxu0 %v570
    %617 = vmatprep.subr.bf16.mxu0 0
    %618 = vmatpush2.bf16.msra.mxu0 %v569
    %619 = vmatprep.subr.bf16.mxu0 0
    %620 = vmatpush2.bf16.msra.mxu0 %v568
    %621 = vmatprep.subr.bf16.mxu0 0
    %622 = vmatpush2.bf16.msra.mxu0 %v567
    %623 = vmatprep.mubr.bf16.mxu0 %v458
    %624 = vmatmul.mubr.bf16.gmra.mxu0 %v457
    %v625 = vpop.f32.mrf.mxu0
    %v626 = vadd.f32 %v494, %v625
    %v627 = vpop.f32.mrf.mxu0
    %v628 = vpop.f32.mrf.mxu0
    %v629 = vpop.f32.mrf.mxu0
    %630 = vdwg.mxu0
    %v631 = vlaneseq
    %v632 = vshrl.u32 %v631, 7
    %v633 = vsub.s32 2, %v632
    %v634 = vrot.slane %v68, %v633
    %v635 = vmul.f32 %v626, %v634
    %v636 = vtanh.pop %v635
    %v637 = vlaneseq
    %v638 = vshrl.u32 %v637, 7
    %v639 = vsub.s32 3, %v638
    %v640 = vrot.slane %v68, %v639
    %v641 = vmul.f32 %v636, %v640
    %v642 = vlaneseq
    %v643 = vshrl.u32 %v642, 7
    %v644 = vsub.s32 4, %v643
    %v645 = vrot.slane %v68, %v644
    %v646 = vadd.f32 %v641, %v645
    %vm647 = vcmask 64512
    %648 = vst.msk [vmem:[#allocation8] sm:$0xff] %vm647, %v646
    // Predicated region
    $region38: #{tpu_custom_call.1} parent=1 // pred_check
      _
    $region39: #{tpu_custom_call.1} parent=1 // pred_check_branch
      %650 = sbr.rel (0) target = $region41
    $region40: #{tpu_custom_call.1} parent=1 // pred_region
      %s652 = ssub.s32 128, 128
      %653 = vsyncadd [#allocation4], %s652
      %s655 = sshll.u32 [#allocation8], 4
      %s656 = int_to_ptr.vmem [resolvable:$true] %s655
      %658 = dma.vmem_to_hbm [thread:$0]  %s656, 128, %s6, [#allocation4]
    $region41: #{tpu_custom_call.1} parent=1 // pred_fallthru
      _
    // Predicated region
    $region42: #{tpu_custom_call.1} parent=1 // pred_check
      _
    $region43: #{tpu_custom_call.1} parent=1 // pred_check_branch
      %660 = sbr.rel (0) target = $region45
    $region44: #{tpu_custom_call.1} parent=1 // pred_region
      %661 = dma.done [#allocation4], 128
    $region45: #{tpu_custom_call.1} parent=1 // pred_fallthru
      _
    %662 = vsyncpa [#allocation3], 1
    %663 = vsyncpa [#allocation6], 1
    %664 = vsyncpa [#allocation4], 1

</llo_original>
